<compile_context>
chip_gen: v7x
topology: tpu7x:2x2x1
jax: 0.10.0
libtpu: 0.0.40
codegen_flags: <defaults>
</compile_context>

<pallas_src>
import functools
import math

import numpy as np
import jax
import jax.numpy as jnp
from jax import lax
from jax.experimental import pallas as pl
from jax.experimental.pallas import tpu as pltpu


D_MODEL = 1936
NHEAD = 8
ATTN_DH_PAD = 256                      # head dim 242 zero-padded to a lane tile
VMEM_LIMIT = 64 * 1024 * 1024          # <= physical VMEM on v5e / v6e / v7x


# ----------------------------------------------------------------------------
# Tiling helpers
# ----------------------------------------------------------------------------
def _round_up(x, m):
    return ((x + m - 1) // m) * m


def _pad_and_tile(dim, max_tile=512):
    """Pad `dim` to a multiple of 128 and pick the largest tile in
    {512,384,256,128} that divides the padded dim with <=7% overshoot."""
    base = _round_up(dim, 128)
    for t in (512, 384, 256, 128):
        if t > max_tile:
            continue
        padded = _round_up(dim, t)
        if padded <= base * 1.07:
            return padded, t
    return base, 128


def _choose_m(m):
    """Row (M) tiling for bf16 matmul inputs (sublane multiple of 16)."""
    m16 = _round_up(m, 16)
    if m16 <= 512:
        return m16, m16
    return _round_up(m, 256), 256


def _choose_m_ln(m):
    """Row tiling for the f32 layernorm kernel."""
    m8 = _round_up(m, 8)
    if m8 <= 256:
        return m8, m8
    return _round_up(m, 128), 128


# ----------------------------------------------------------------------------
# Pallas linear kernel: y = act(x @ w + b) [* bn_scale + bn_shift]
# bf16 operands, f32 accumulation; bias folded into accumulator init.
# ----------------------------------------------------------------------------
def _linear_kernel(x_ref, w_ref, b_ref, *rest, activation, fuse_bn):
    if fuse_bn:
        s_ref, t_ref, o_ref, acc_ref = rest
    else:
        o_ref, acc_ref = rest
    k = pl.program_id(2)

    @pl.when(k == 0)
    def _():
        # bias folded into the accumulator init (fetched once per (m, n) tile)
        acc_ref[...] = jnp.broadcast_to(b_ref[...], acc_ref.shape)

    acc_ref[...] += jnp.dot(x_ref[...], w_ref[...],
                            preferred_element_type=jnp.float32)

    @pl.when(k == pl.num_programs(2) - 1)
    def _():
        y = acc_ref[...]
        if activation == "relu":
            y = jnp.maximum(y, 0.0)
        elif activation == "sigmoid":
            y = jax.nn.sigmoid(y)
        if fuse_bn:
            # eval-mode BatchNorm folded in as a per-channel affine epilogue
            y = y * s_ref[...] + t_ref[...]
        o_ref[...] = y.astype(o_ref.dtype)


@functools.partial(jax.jit, static_argnames=("n_out", "activation"))
def _linear_call(x, wp, bp, sp, tp, *, n_out, activation):
    m, k_in = x.shape
    kp, np_pad = wp.shape
    kp2, tk = _pad_and_tile(k_in)
    np2, tn = _pad_and_tile(n_out)
    assert kp == kp2 and np_pad == np2, (kp, kp2, np_pad, np2)
    mp, tm = _choose_m(m)

    xp = jnp.pad(x.astype(jnp.bfloat16), ((0, mp - m), (0, kp - k_in)))

    fuse_bn = sp is not None
    in_specs = [
        pl.BlockSpec((tm, tk), lambda i, j, l: (i, l)),
        pl.BlockSpec((tk, tn), lambda i, j, l: (l, j)),
        pl.BlockSpec((1, tn), lambda i, j, l: (0, j)),
    ]
    inputs = [xp, wp, bp]
    if fuse_bn:
        in_specs.append(pl.BlockSpec((1, tn), lambda i, j, l: (0, j)))
        in_specs.append(pl.BlockSpec((1, tn), lambda i, j, l: (0, j)))
        inputs.extend([sp, tp])

    out = pl.pallas_call(
        functools.partial(_linear_kernel, activation=activation,
                          fuse_bn=fuse_bn),
        out_shape=jax.ShapeDtypeStruct((mp, np_pad), jnp.float32),
        grid_spec=pltpu.PrefetchScalarGridSpec(
            num_scalar_prefetch=0,
            grid=(mp // tm, np_pad // tn, kp // tk),
            in_specs=in_specs,
            out_specs=pl.BlockSpec((tm, tn), lambda i, j, l: (i, j)),
            scratch_shapes=[pltpu.VMEM((tm, tn), jnp.float32)],
        ),
        compiler_params=pltpu.CompilerParams(
            dimension_semantics=("parallel", "parallel", "arbitrary"),
            vmem_limit_bytes=VMEM_LIMIT),
    )(*inputs)
    return out[:m, :n_out]


def pallas_linear(x, lin, activation=None):
    return _linear_call(x, lin["w"], lin["b"], lin.get("s"), lin.get("t"),
                        n_out=lin["N"], activation=activation)


def prep_linear(w, b, bn=None):
    """Pre-pad + pre-cast a (K, N) weight once; optionally fold eval-mode BN."""
    k_in, n_out = w.shape
    kp, _ = _pad_and_tile(k_in)
    np_pad, _ = _pad_and_tile(n_out)
    wp = jnp.zeros((kp, np_pad), jnp.bfloat16).at[:k_in, :n_out].set(
        w.astype(jnp.bfloat16))
    bp = jnp.zeros((1, np_pad), jnp.float32).at[0, :n_out].set(
        b.astype(jnp.float32))
    lin = {"w": wp, "b": bp, "N": n_out}
    if bn is not None:
        gamma, beta, mean, var, eps = bn
        scale = gamma / jnp.sqrt(var + eps)
        shift = beta - mean * scale
        lin["s"] = jnp.zeros((1, np_pad), jnp.float32).at[0, :n_out].set(
            scale.astype(jnp.float32))
        lin["t"] = jnp.zeros((1, np_pad), jnp.float32).at[0, :n_out].set(
            shift.astype(jnp.float32))
    return lin


# ----------------------------------------------------------------------------
# Fused residual-add + LayerNorm kernel (f32 VPU math, M-tiled)
# ----------------------------------------------------------------------------
def _add_ln_kernel(x_ref, r_ref, g_ref, b_ref, o_ref, *, eps):
    x = x_ref[...] + r_ref[...]
    mu = jnp.mean(x, axis=-1, keepdims=True)
    var = jnp.mean(jnp.square(x - mu), axis=-1, keepdims=True)
    o_ref[...] = ((x - mu) * lax.rsqrt(var + eps) * g_ref[...] + b_ref[...]
                  ).astype(o_ref.dtype)


def pallas_add_layernorm(x, res, gamma, beta, eps=1e-5):
    m, d = x.shape
    mp, tm = _choose_m_ln(m)
    xp = jnp.pad(x.astype(jnp.float32), ((0, mp - m), (0, 0)))
    rp = jnp.pad(res.astype(jnp.float32), ((0, mp - m), (0, 0)))
    out = pl.pallas_call(
        functools.partial(_add_ln_kernel, eps=eps),
        out_shape=jax.ShapeDtypeStruct((mp, d), jnp.float32),
        grid_spec=pltpu.PrefetchScalarGridSpec(
            num_scalar_prefetch=0,
            grid=(mp // tm,),
            in_specs=[
                pl.BlockSpec((tm, d), lambda i: (i, 0)),
                pl.BlockSpec((tm, d), lambda i: (i, 0)),
                pl.BlockSpec((1, d), lambda i: (0, 0)),
                pl.BlockSpec((1, d), lambda i: (0, 0)),
            ],
            out_specs=pl.BlockSpec((tm, d), lambda i: (i, 0)),
        ),
        compiler_params=pltpu.CompilerParams(
            dimension_semantics=("parallel",),
            vmem_limit_bytes=VMEM_LIMIT),
    )(xp, rp, gamma.reshape(1, d).astype(jnp.float32),
      beta.reshape(1, d).astype(jnp.float32))
    return out[:m]


# ----------------------------------------------------------------------------
# Multi-head attention core: query-tiled, bias built in-kernel
# ----------------------------------------------------------------------------
def _attn_kernel(q_ref, k_ref, v_ref, kb_ref, cb_ref, o_ref, *, scale):
    # q: (H, tq, Dh) bf16, k/v: (H, S, Dh) bf16, kb: (1, S), cb: (tq, S) f32
    s = jnp.einsum("hqd,hkd->hqk", q_ref[...], k_ref[...],
                   preferred_element_type=jnp.float32)
    s = s * scale + kb_ref[...][None] + cb_ref[...][None]
    mx = jnp.max(s, axis=-1, keepdims=True)
    p = jnp.exp(s - mx)
    denom = jnp.sum(p, axis=-1, keepdims=True)
    p = p * pl.reciprocal(denom, approx=True)
    o_ref[...] = jnp.einsum("hqk,hkd->hqd", p.astype(jnp.bfloat16), v_ref[...],
                            preferred_element_type=jnp.float32)


def _attn_seq_tiles(s):
    if s <= 128:
        sp = _round_up(s, 16)
        return sp, sp
    sp = _round_up(s, 128)
    return sp, 128


def pallas_mha_core(q, k, v, kb, cb, *, scale, tq):
    b, h, sp, dh = q.shape
    return pl.pallas_call(
        functools.partial(_attn_kernel, scale=scale),
        out_shape=jax.ShapeDtypeStruct((b, h, sp, dh), jnp.float32),
        grid_spec=pltpu.PrefetchScalarGridSpec(
            num_scalar_prefetch=0,
            grid=(b, sp // tq),
            in_specs=[
                pl.BlockSpec((None, h, tq, dh), lambda bi, qi: (bi, 0, qi, 0)),
                pl.BlockSpec((None, h, sp, dh), lambda bi, qi: (bi, 0, 0, 0)),
                pl.BlockSpec((None, h, sp, dh), lambda bi, qi: (bi, 0, 0, 0)),
                pl.BlockSpec((None, 1, sp), lambda bi, qi: (bi, 0, 0)),
                pl.BlockSpec((tq, sp), lambda bi, qi: (qi, 0)),
            ],
            out_specs=pl.BlockSpec((None, h, tq, dh),
                                   lambda bi, qi: (bi, 0, qi, 0)),
        ),
        compiler_params=pltpu.CompilerParams(
            dimension_semantics=("parallel", "parallel"),
            vmem_limit_bytes=VMEM_LIMIT),
    )(q, k, v, kb, cb)


# ----------------------------------------------------------------------------
# Transformer encoder layer (post-norm, relu FFN, like nn.TransformerEncoderLayer)
# TODO(synk): dropout layers are skipped (eval-mode semantics).
# ----------------------------------------------------------------------------
def multi_head_attention(x, key_bias, causal_bias, p):
    b, s, d = x.shape
    dh = d // NHEAD
    qkv = pallas_linear(x.reshape(b * s, d), p["in_proj"])       # (B*S, 3D) f32
    qkv = qkv.reshape(b, s, 3, NHEAD, dh)
    q = jnp.transpose(qkv[:, :, 0], (0, 2, 1, 3))
    k = jnp.transpose(qkv[:, :, 1], (0, 2, 1, 3))
    v = jnp.transpose(qkv[:, :, 2], (0, 2, 1, 3))

    sp, tq = _attn_seq_tiles(s)
    pad_s, pad_d = sp - s, ATTN_DH_PAD - dh

    def prep(t):
        return jnp.pad(t, ((0, 0), (0, 0), (0, pad_s), (0, pad_d))
                       ).astype(jnp.bfloat16)

    kb = jnp.pad(key_bias, ((0, 0), (0, 0), (0, pad_s)),
                 constant_values=-1e9).astype(jnp.float32)        # (B,1,Sp)
    cb = jnp.pad(causal_bias, ((0, pad_s), (0, pad_s))).astype(jnp.float32)

    out = pallas_mha_core(prep(q), prep(k), prep(v), kb, cb,
                          scale=1.0 / math.sqrt(dh), tq=tq)
    out = out[:, :, :s, :dh]
    out = jnp.transpose(out, (0, 2, 1, 3)).reshape(b * s, d)
    return pallas_linear(out, p["out_proj"])


def encoder_layer(x, key_bias, causal_bias, p):
    b, s, d = x.shape
    attn = multi_head_attention(x, key_bias, causal_bias, p)
    y = pallas_add_layernorm(x.reshape(b * s, d), attn, p["ln1_g"], p["ln1_b"])
    ff = pallas_linear(y, p["lin1"], activation="relu")
    ff = pallas_linear(ff, p["lin2"])
    y2 = pallas_add_layernorm(y, ff, p["ln2_g"], p["ln2_b"])
    return y2.reshape(b, s, d)


def run_transformer(x, pad_mask, causal_mask, layers):
    _, s, _ = x.shape
    key_bias = jnp.where(jnp.asarray(pad_mask)[:, None, :], -1e9, 0.0
                         ).astype(jnp.float32)                    # (B,1,S)
    if causal_mask is None:
        causal_bias = jnp.zeros((s, s), jnp.float32)
    else:
        causal_bias = jnp.where(jnp.asarray(causal_mask), -1e9, 0.0
                                ).astype(jnp.float32)
    out = x
    for p in layers:
        out = encoder_layer(out, key_bias, causal_bias, p)
    return out


# ----------------------------------------------------------------------------
# Conv helpers: im2col (glue) + Pallas matmul (BN fused); maxpool is glue.
# ----------------------------------------------------------------------------
def im2col(x_nhwc, kh, kw, stride, pad):
    n, h, w, c = x_nhwc.shape
    xp = jnp.pad(x_nhwc, ((0, 0), (pad, pad), (pad, pad), (0, 0)))
    oh = (h + 2 * pad - kh) // stride + 1
    ow = (w + 2 * pad - kw) // stride + 1
    cols = []
    for i in range(kh):
        for j in range(kw):
            cols.append(xp[:, i:i + stride * oh:stride,
                           j:j + stride * ow:stride, :])
    cols = jnp.stack(cols, axis=-2)                     # (N,OH,OW,kh*kw,C)
    cols = jnp.transpose(cols, (0, 1, 2, 4, 3))         # (N,OH,OW,C,kh*kw)
    return cols.reshape(n, oh, ow, c * kh * kw), oh, ow


def maxpool2d(x_nhwc, k, stride, pad):
    return lax.reduce_window(
        x_nhwc, -jnp.inf, lax.max,
        (1, k, k, 1), (1, stride, stride, 1),
        [(0, 0), (pad, pad), (pad, pad), (0, 0)])


def sinusoidal_pe(max_len, d_model):
    pos = np.arange(max_len)[:, None].astype(np.float32)
    div = np.exp(np.arange(0, d_model, 2).astype(np.float32)
                 * (-math.log(10000.0) / d_model))
    pe = np.zeros((max_len, d_model), np.float32)
    pe[:, 0::2] = np.sin(pos * div)
    pe[:, 1::2] = np.cos(pos * div)
    return jnp.asarray(pe)


# ----------------------------------------------------------------------------
# Parameters (deterministic synthetic init; weights pre-padded bf16, (K, N))
# ----------------------------------------------------------------------------
def init_params(key, num_obj_classes=10, attention_class_num=3,
                spatial_class_num=6, contact_class_num=17):
    keys = iter(jax.random.split(key, 64))

    def dense_raw(k_in, k_out, scale=0.02):
        w = jax.random.normal(next(keys), (k_in, k_out), jnp.float32) * scale
        return w, jnp.zeros((k_out,), jnp.float32)

    def dense(k_in, k_out):
        return prep_linear(*dense_raw(k_in, k_out))

    def conv_bn(k_in, k_out):
        w, b = dense_raw(k_in, k_out)
        # TODO(synk): torch default is train-mode BN (batch stats); eval-mode
        # running stats are folded into the conv matmul epilogue here.
        bn = (jnp.ones((k_out,), jnp.float32), jnp.zeros((k_out,), jnp.float32),
              jnp.zeros((k_out,), jnp.float32), jnp.ones((k_out,), jnp.float32),
              1e-5)
        return prep_linear(w, b, bn=bn)

    def enc_layer():
        return {
            "in_proj": dense(D_MODEL, 3 * D_MODEL),
            "out_proj": dense(D_MODEL, D_MODEL),
            "lin1": dense(D_MODEL, 2048),
            "lin2": dense(2048, D_MODEL),
            "ln1_g": jnp.ones((D_MODEL,), jnp.float32),
            "ln1_b": jnp.zeros((D_MODEL,), jnp.float32),
            "ln2_g": jnp.ones((D_MODEL,), jnp.float32),
            "ln2_b": jnp.zeros((D_MODEL,), jnp.float32),
        }

    params = {
        "subj_fc": dense(2376, 512),
        "obj_fc": dense(2376, 512),
        "vr_fc": dense(256 * 49, 512),
        "union": dense(1024, 256),
        "conv1": conv_bn(2 * 49, 128),
        "conv2": conv_bn(128 * 9, 256),
        # TODO(synk): obj_edge_vectors loads GloVe from disk; synthetic init here.
        "obj_embed": jax.random.normal(next(keys), (num_obj_classes, 200),
                                       jnp.float32) * 0.1,
        "local": [enc_layer()],
        "global": [enc_layer() for _ in range(3)],
        # TODO(synk): GetBoxes definition not in the snippet; SceneSayer MLP assumed:
        # Linear(d,1024)-ReLU-Linear(1024,1024)-ReLU-Linear(1024,5)-ReLU.
        "subj_box_1": dense(D_MODEL, 1024),
        "subj_box_2": dense(1024, 1024),
        "subj_box_3": dense(1024, 5),
        "pe": sinusoidal_pe(400, D_MODEL),
    }
    # fused a_rel / s_rel / c_rel heads (one matmul, split after)
    wa, ba = dense_raw(D_MODEL, attention_class_num)
    ws, bs = dense_raw(D_MODEL, spatial_class_num)
    wc, bc = dense_raw(D_MODEL, contact_class_num)
    params["rel_heads"] = prep_linear(jnp.concatenate([wa, ws, wc], axis=1),
                                      jnp.concatenate([ba, bs, bc]))
    params["rel_splits"] = (attention_class_num, spatial_class_num,
                            contact_class_num)
    params["obj_embed2"] = params["obj_embed"]  # torch clones the same vectors
    return params


# ----------------------------------------------------------------------------
# STTran forward (mode='predcls', script_required=False)
# ----------------------------------------------------------------------------
def sttran_forward(params, entry):
    # TODO(synk): ObjectClassifierTransformer is an external module; entry is
    # assumed to already carry its outputs (features / pred_labels / pair_idx).
    features = entry["features"]
    pair_idx = np.asarray(entry["pair_idx"])
    boxes = entry["boxes"]
    pred_labels = np.asarray(entry["pred_labels"])

    subj_rep = pallas_linear(features[pair_idx[:, 0]], params["subj_fc"])
    obj_rep = pallas_linear(features[pair_idx[:, 1]], params["obj_fc"])
    entry["subj_rep_actual"] = subj_rep

    # union_func1(union_feat) + conv(spatial_masks)     (NHWC compute)
    union_feat = jnp.transpose(entry["union_feat"], (0, 2, 3, 1))
    p_cnt = union_feat.shape[0]
    u = pallas_linear(union_feat.reshape(p_cnt * 49, 1024),
                      params["union"]).reshape(p_cnt, 7, 7, 256)

    sm = jnp.transpose(entry["spatial_masks"], (0, 2, 3, 1))      # (P,27,27,2)
    c1, oh, ow = im2col(sm, 7, 7, 2, 3)
    c1 = pallas_linear(c1.reshape(p_cnt * oh * ow, 2 * 49),
                       params["conv1"], activation="relu")        # BN fused
    c1 = maxpool2d(c1.reshape(p_cnt, oh, ow, 128), 3, 2, 1)       # (P,7,7,128)
    c2, oh2, ow2 = im2col(c1, 3, 3, 1, 1)
    c2 = pallas_linear(c2.reshape(p_cnt * oh2 * ow2, 128 * 9),
                       params["conv2"], activation="relu")        # BN fused
    c2 = c2.reshape(p_cnt, oh2, ow2, 256)

    vr = u + c2                                                    # (P,7,7,256)
    vr = jnp.transpose(vr, (0, 3, 1, 2)).reshape(p_cnt, 256 * 49)  # NCHW flatten
    vr = pallas_linear(vr, params["vr_fc"])

    x_visual = jnp.concatenate([subj_rep, obj_rep, vr], axis=1)

    subj_class = pred_labels[pair_idx[:, 0]]
    obj_class = pred_labels[pair_idx[:, 1]]
    subj_emb = params["obj_embed"][jnp.asarray(subj_class)]
    obj_emb = params["obj_embed2"][jnp.asarray(obj_class)]
    x_semantic = jnp.concatenate([subj_emb, obj_emb], axis=1)
    rel_features = jnp.concatenate([x_visual, x_semantic], axis=1)  # (P, 1936)

    # ---- local transformer over frames (pad_sequence glue on host) ----
    boxes_np = np.asarray(boxes)
    im_indices = boxes_np[pair_idx[:, 1], 0]
    frames = [np.where(im_indices == l)[0] for l in np.unique(im_indices)]
    b_f, s_f = len(frames), max(len(f) for f in frames)
    frame_feats = jnp.zeros((b_f, s_f, D_MODEL), jnp.float32)
    pad_mask_f = np.ones((b_f, s_f), bool)
    for i, idx in enumerate(frames):
        frame_feats = frame_feats.at[i, :len(idx)].set(
            rel_features[jnp.asarray(idx)])
        pad_mask_f[i, :len(idx)] = False
    rel_local = run_transformer(frame_feats, pad_mask_f, None, params["local"])
    rel_features = jnp.concatenate(
        [rel_local[i, :len(idx)] for i, idx in enumerate(frames)], axis=0)

    # ---- global transformer over object-class sequences ----
    sequences = []
    for l in np.unique(obj_class):
        kk = np.where(obj_class.reshape(-1) == l)[0]
        if len(kk) > 0:
            sequences.append(kk)
    b_s, s_s = len(sequences), max(len(sq) for sq in sequences)
    seq_feats = jnp.zeros((b_s, s_s, D_MODEL), jnp.float32)
    pad_mask_s = np.ones((b_s, s_s), bool)
    for i, idx in enumerate(sequences):
        seq_feats = seq_feats.at[i, :len(idx)].set(rel_features[jnp.asarray(idx)])
        pad_mask_s[i, :len(idx)] = False
    causal = np.triu(np.ones((s_s, s_s), bool), k=1)
    # positional encoding (pos_index is None since mode != 'sgdet')
    seq_feats = seq_feats + params["pe"][None, :s_s, :]

    out = run_transformer(seq_feats, pad_mask_s, causal, params["global"])

    rel_flat = jnp.concatenate(
        [out[i, :len(idx)] for i, idx in enumerate(sequences)], axis=0)
    indices_flat = jnp.asarray(np.concatenate(sequences).astype(np.int32))
    global_output = jnp.zeros_like(rel_features).at[indices_flat].set(rel_flat)

    # fused relation heads
    rel_out = pallas_linear(global_output, params["rel_heads"])
    a_n, s_n, c_n = params["rel_splits"]
    entry["attention_distribution"] = rel_out[:, :a_n]
    entry["spatial_distribution"] = jax.nn.sigmoid(rel_out[:, a_n:a_n + s_n])
    entry["contacting_distribution"] = jax.nn.sigmoid(
        rel_out[:, a_n + s_n:a_n + s_n + c_n])

    h = pallas_linear(global_output, params["subj_box_1"], activation="relu")
    h = pallas_linear(h, params["subj_box_2"], activation="relu")
    entry["subject_boxes_dsg"] = pallas_linear(h, params["subj_box_3"],
                                               activation="relu")

    entry["global_output"] = global_output
    entry["subject_boxes_rcnn"] = boxes[
        jnp.asarray(pair_idx[:, 0].astype(np.int32)), 1:]
    return entry


# ----------------------------------------------------------------------------
if __name__ == "__main__":
    key = jax.random.PRNGKey(0)
    kp, kf, ku, ks = jax.random.split(key, 4)
    params = init_params(kp)

    # Synthetic scene: 3 frames, each with 1 person + 2 objects -> 9 boxes, 6 pairs.
    num_frames = 3
    boxes_list, pred_labels, pair_idx = [], [], []
    bi = 0
    for f in range(num_frames):
        person = bi; bi += 1
        pred_labels.append(1)
        boxes_list.append([f, 0.1, 0.1, 0.5, 0.5])
        for o in range(2):
            obj = bi; bi += 1
            pred_labels.append(2 + o)
            boxes_list.append([f, 0.2 * o, 0.2, 0.6, 0.8])
            pair_idx.append([person, obj])
    num_boxes, num_pairs = bi, len(pair_idx)

    entry = {
        "features": jax.random.normal(kf, (num_boxes, 2376), jnp.float32),
        "pair_idx": np.array(pair_idx, np.int32),
        "boxes": jnp.asarray(np.array(boxes_list, np.float32)),
        "pred_labels": np.array(pred_labels, np.int32),
        "union_feat": jax.random.normal(ku, (num_pairs, 1024, 7, 7), jnp.float32),
        "spatial_masks": (jax.random.uniform(ks, (num_pairs, 2, 27, 27)) > 0.5
                          ).astype(jnp.float32),
    }

    out = sttran_forward(params, entry)
    jax.block_until_ready((out["attention_distribution"],
                           out["spatial_distribution"],
                           out["contacting_distribution"],
                           out["subject_boxes_dsg"],
                           out["global_output"]))
    print("KERNEL_OK")
</pallas_src>

<mosaic_0001>
module attributes {stable_mosaic.version = 11 : i64} {
  func.func @_linear_kernel(%arg0: i32, %arg1: i32, %arg2: i32, %arg3: memref<16x512xbf16, #tpu.memory_space<vmem>>, %arg4: memref<512x512xbf16, #tpu.memory_space<vmem>>, %arg5: memref<1x512xf32, #tpu.memory_space<vmem>>, %arg6: memref<16x512xf32, #tpu.memory_space<vmem>>, %arg7: memref<16x512xf32, #tpu.memory_space<vmem>>) attributes {dimension_semantics = [#tpu.dimension_semantics<parallel>, #tpu.dimension_semantics<parallel>, #tpu.dimension_semantics<arbitrary>], iteration_bounds = array<i64: 1, 1, 5>, scalar_prefetch = 0 : i64, scratch_operands = 1 : i64, tpu.core_type = #tpu.core_type<tc>, window_params = [{transform_indices = @transform_0, window_bounds = array<i64: 16, 512>}, {transform_indices = @transform_1, window_bounds = array<i64: 512, 512>}, {transform_indices = @transform_2, window_bounds = array<i64: 1, 512>}, {transform_indices = @transform_3, window_bounds = array<i64: 16, 512>}]} {
    %c0_i32 = arith.constant 0 : i32
    %0 = arith.cmpi eq, %arg2, %c0_i32 : i32
    %1 = arith.extui %0 : i1 to i32
    %c0_i32_0 = arith.constant 0 : i32
    %2 = arith.cmpi ne, %1, %c0_i32_0 : i32
    scf.if %2 {
      %c0_9 = arith.constant 0 : index
      %c0_10 = arith.constant 0 : index
      %12 = vector.load %arg5[%c0_9, %c0_10] : memref<1x512xf32, #tpu.memory_space<vmem>>, vector<1x512xf32>
      %13 = vector.shape_cast %12 : vector<1x512xf32> to vector<1x512xf32>
      %14 = vector.broadcast %13 : vector<1x512xf32> to vector<16x512xf32>
      %c0_11 = arith.constant 0 : index
      %c0_12 = arith.constant 0 : index
      %15 = vector.load %arg7[%c0_11, %c0_12] : memref<16x512xf32, #tpu.memory_space<vmem>>, vector<16x512xf32>
      tpu.vector_store %arg7[%c0_11, %c0_12], %14 {strides = array<i32>} : memref<16x512xf32, #tpu.memory_space<vmem>>, vector<16x512xf32>,
    } else {
    }
    %c0 = arith.constant 0 : index
    %c0_1 = arith.constant 0 : index
    %3 = vector.load %arg7[%c0, %c0_1] : memref<16x512xf32, #tpu.memory_space<vmem>>, vector<16x512xf32>
    %c0_2 = arith.constant 0 : index
    %c0_3 = arith.constant 0 : index
    %4 = vector.load %arg3[%c0_2, %c0_3] : memref<16x512xbf16, #tpu.memory_space<vmem>>, vector<16x512xbf16>
    %c0_4 = arith.constant 0 : index
    %c0_5 = arith.constant 0 : index
    %5 = vector.load %arg4[%c0_4, %c0_5] : memref<512x512xbf16, #tpu.memory_space<vmem>>, vector<512x512xbf16>
    %cst = arith.constant dense<0.000000e+00> : vector<16x512xf32>
    %6 = tpu.matmul %4, %5, %cst {dimension_numbers = #tpu.dot_dimension_numbers<[1], [0], [0], [1], [0, 0, 1, 1], [], []>} : vector<16x512xbf16>, vector<512x512xbf16>, vector<16x512xf32> -> vector<16x512xf32>
    %7 = arith.addf %3, %6 : vector<16x512xf32>
    %c0_6 = arith.constant 0 : index
    %c0_7 = arith.constant 0 : index
    %8 = vector.load %arg7[%c0_6, %c0_7] : memref<16x512xf32, #tpu.memory_space<vmem>>, vector<16x512xf32>
    tpu.vector_store %arg7[%c0_6, %c0_7], %7 {strides = array<i32>} : memref<16x512xf32, #tpu.memory_space<vmem>>, vector<16x512xf32>,
    %c4_i32 = arith.constant 4 : i32
    %9 = arith.cmpi eq, %arg2, %c4_i32 : i32
    %10 = arith.extui %9 : i1 to i32
    %c0_i32_8 = arith.constant 0 : i32
    %11 = arith.cmpi ne, %10, %c0_i32_8 : i32
    scf.if %11 {
      %c0_9 = arith.constant 0 : index
      %c0_10 = arith.constant 0 : index
      %12 = vector.load %arg7[%c0_9, %c0_10] : memref<16x512xf32, #tpu.memory_space<vmem>>, vector<16x512xf32>
      %c0_11 = arith.constant 0 : index
      %c0_12 = arith.constant 0 : index
      %13 = vector.load %arg6[%c0_11, %c0_12] : memref<16x512xf32, #tpu.memory_space<vmem>>, vector<16x512xf32>
      tpu.vector_store %arg6[%c0_11, %c0_12], %12 {strides = array<i32>} : memref<16x512xf32, #tpu.memory_space<vmem>>, vector<16x512xf32>,
    } else {
    }
    return
  }
  func.func @transform_0(%arg0: i32, %arg1: i32, %arg2: i32) -> (i32, i32) {
    %c0_i32 = arith.constant 0 : i32
    return %arg0, %arg2 : i32, i32
  }
  func.func @transform_1(%arg0: i32, %arg1: i32, %arg2: i32) -> (i32, i32) {
    %c0_i32 = arith.constant 0 : i32
    return %arg2, %arg1 : i32, i32
  }
  func.func @transform_2(%arg0: i32, %arg1: i32, %arg2: i32) -> (i32, i32) {
    %c0_i32 = arith.constant 0 : i32
    %c0_i32_0 = arith.constant 0 : i32
    return %c0_i32, %arg1 : i32, i32
  }
  func.func @transform_3(%arg0: i32, %arg1: i32, %arg2: i32) -> (i32, i32) {
    %c0_i32 = arith.constant 0 : i32
    return %arg0, %arg1 : i32, i32
  }
}

</mosaic_0001>

<llo_original>
// kernel: _linear_call.1
$region0: #{_linear_call.1}
  #allocation0 [shape = 'u32[]', space=smem, size = 0x4, offset = 0x4, fixed_abs, tag = 'smem constant byte address 0x4 - core index']
  #allocation1 [shape = 'u32[144,128]{1,0:T(1,128)}', space=vmem, size = 0x12000, scoped, tag = 'internal scratch']
  #allocation2 [shape = 'f32[16,512]{1,0:T(8,128)}', space=vmem, size = 0x8000, scoped, tag = 'scratch operand']
  %s0 = inlined_call_operand.hbm [shape: bf16[16,2560], index: 0, kind: input, shape index: {}]
  %s1 = inlined_call_operand.hbm [shape: bf16[2560,512], index: 1, kind: input, shape index: {}]
  %s2 = inlined_call_operand.hbm [shape: f32[1,512], index: 2, kind: input, shape index: {}]
  %s3 = inlined_call_operand.hbm [shape: f32[16,512], index: 3, kind: output, shape index: {}]
  %s4 = sld [smem:[#allocation0]]
  $region65: #{_linear_call.1} parent=0
    _
  %s6 = ssub.s32 1, %s4
  %s7 = scalar_select 0, %s6, %s4
  $region1: #{_linear_call.1} parent=0
    #allocation3 [shape = 'u8[32768]{0}', space=vmem, size = 0x8000, scoped, tag = 'input window, operand 0']
    #allocation4 [shape = 's32[2]{0}', space=sflag, size = 0x8, scoped, tag = 'scoped memory for _linear_call.1']
    #allocation5 [shape = 's32[2]{0}', space=sflag, size = 0x8, scoped, tag = 'scoped memory for _linear_call.1']
    #allocation6 [shape = 'u8[1048576]{0}', space=vmem, size = 0x100000, scoped, tag = 'input window, operand 1']
    #allocation7 [shape = 's32[2]{0}', space=sflag, size = 0x8, scoped, tag = 'scoped memory for _linear_call.1']
    #allocation8 [shape = 'u8[2048]{0}', space=vmem, size = 0x800, scoped, tag = 'input window, operand 2, single buffered']
    #allocation9 [shape = 'u8[32768]{0}', space=vmem, size = 0x8000, scoped, tag = 'output window, operand 0, single buffered']
    %8 = vsyncpa [#allocation4], 0
    %s9 = scalar_lea.sflag [#allocation4], 1
    %10 = vsyncpa %s9, 0
    %11 = vsyncpa [#allocation7], 0
    %s12 = scalar_lea.sflag [#allocation7], 1
    %13 = vsyncpa %s12, 0
    %14 = vsyncpa [#allocation5], 0
    loop: start=0, step=1, limit=7
    $region2: #{_linear_call.1} parent=1 // loop_pre_header
      _
    $region3: #{_linear_call.1} parent=1 // loop_header
      %s16 = sphi 0, %s20
      %p17 = scmp.ge.s32.totalorder %s16, 7
      %s23 = sphi 0, %s42
      %s24 = sphi 0, %s38
      %s25 = sphi 0, %s34
      %s26 = sphi 0, %s23
      %s27 = sphi 0, %s24
      %s28 = sphi 0, %s25
      %s29 = sphi 0, %s26
      %s30 = sphi 0, %s27
      %s31 = sphi 0, %s28
      %s47 = sphi 0, %s49
      %s50 = sphi 0, %s47
      %s51 = sphi 0, %s50
      %s67 = sphi 0, %s51
      %s75 = sphi 0, %s77
      %s78 = sphi 0, %s75
      %s79 = sphi 0, %s78
      %s95 = sphi 0, %s79
      %s101 = sphi 0, %s103
      %s104 = sphi 0, %s101
      %s105 = sphi 0, %s104
      %s121 = sphi 0, %s105
      %s129 = sphi 0, %s131
      %s132 = sphi 0, %s129
      %s133 = sphi 0, %s132
      %s149 = sphi 0, %s133
    $region4: #{_linear_call.1} parent=1 // loop_header_branch
      %19 = sbr.rel (%p17) target = $region8
    $region5: #{_linear_call.1} parent=1 // loop_body
      %s21 = ssub.s32 %s16, 1
      %s22 = ssub.s32 %s16, 2
      %s32 = sadd.s32 1, %s25
      %p33 = scmp.ge.s32.totalorder %s32, 5
      %s34 = scalar_select %p33, 0, %s32
      %s35 = sadd.s32 1, %s24
      %s36 = scalar_select %p33, %s35, %s24
      %p37 = scmp.ge.s32.totalorder %s36, 1
      %s38 = scalar_select %p37, 0, %s36
      %s39 = sadd.s32 1, %s23
      %s40 = scalar_select %p37, %s39, %s23
      %p41 = scmp.ge.s32.totalorder %s40, 1
      %s42 = scalar_select %p41, 0, %s40
      %s43 = ssub.s32 %s23, %s42
      %s44 = ssub.s32 %s25, %s34
      %s45 = sor.u32 %s43, %s44
      %p46 = scmp.eq.s32.totalorder %s45, 0
      %s48 = sadd.s32 %s47, 1
      %s49 = scalar_select %p46, %s47, %s48
      %p52 = pneg %p46
      %p53 = scmp.eq.s32.totalorder %s16, 4
      %p54 = por %p52, %p53
      %p55 = scmp.ne.s32.totalorder %s47, %s50
      %p56 = scmp.eq.s32.totalorder %s16, 0
      %p57 = por %p55, %p56
      %p58 = scmp.ne.s32.totalorder %s47, %s50
      %p59 = scmp.eq.s32.totalorder %s21, 4
      %p60 = por %p58, %p59
      %p61 = scmp.ne.s32.totalorder %s50, %s51
      %p62 = scmp.eq.s32.totalorder %s21, 0
      %p63 = por %p61, %p62
      %p64 = scmp.ne.s32.totalorder %s50, %s51
      %p65 = scmp.eq.s32.totalorder %s22, 4
      %p66 = por %p64, %p65
      %p68 = scmp.ne.s32.totalorder %s51, %s67
      %p69 = scmp.eq.s32.totalorder %s22, 0
      %p70 = por %p68, %p69
      %s71 = ssub.s32 %s25, %s34
      %s72 = ssub.s32 %s24, %s38
      %s73 = sor.u32 %s71, %s72
      %p74 = scmp.eq.s32.totalorder %s73, 0
      %s76 = sadd.s32 %s75, 1
      %s77 = scalar_select %p74, %s75, %s76
      %p80 = pneg %p74
      %p81 = scmp.eq.s32.totalorder %s16, 4
      %p82 = por %p80, %p81
      %p83 = scmp.ne.s32.totalorder %s75, %s78
      %p84 = scmp.eq.s32.totalorder %s16, 0
      %p85 = por %p83, %p84
      %p86 = scmp.ne.s32.totalorder %s75, %s78
      %p87 = scmp.eq.s32.totalorder %s21, 4
      %p88 = por %p86, %p87
      %p89 = scmp.ne.s32.totalorder %s78, %s79
      %p90 = scmp.eq.s32.totalorder %s21, 0
      %p91 = por %p89, %p90
      %p92 = scmp.ne.s32.totalorder %s78, %s79
      %p93 = scmp.eq.s32.totalorder %s22, 4
      %p94 = por %p92, %p93
      %p96 = scmp.ne.s32.totalorder %s79, %s95
      %p97 = scmp.eq.s32.totalorder %s22, 0
      %p98 = por %p96, %p97
      %s99 = ssub.s32 %s24, %s38
      %p100 = scmp.eq.s32.totalorder %s99, 0
      %s102 = sadd.s32 %s101, 1
      %s103 = scalar_select %p100, %s101, %s102
      %p106 = pneg %p100
      %p107 = scmp.eq.s32.totalorder %s16, 4
      %p108 = por %p106, %p107
      %p109 = scmp.ne.s32.totalorder %s101, %s104
      %p110 = scmp.eq.s32.totalorder %s16, 0
      %p111 = por %p109, %p110
      %p112 = scmp.ne.s32.totalorder %s101, %s104
      %p113 = scmp.eq.s32.totalorder %s21, 4
      %p114 = por %p112, %p113
      %p115 = scmp.ne.s32.totalorder %s104, %s105
      %p116 = scmp.eq.s32.totalorder %s21, 0
      %p117 = por %p115, %p116
      %p118 = scmp.ne.s32.totalorder %s104, %s105
      %p119 = scmp.eq.s32.totalorder %s22, 4
      %p120 = por %p118, %p119
      %p122 = scmp.ne.s32.totalorder %s105, %s121
      %p123 = scmp.eq.s32.totalorder %s22, 0
      %p124 = por %p122, %p123
      %s125 = ssub.s32 %s23, %s42
      %s126 = ssub.s32 %s24, %s38
      %s127 = sor.u32 %s125, %s126
      %p128 = scmp.eq.s32.totalorder %s127, 0
      %s130 = sadd.s32 %s129, 1
      %s131 = scalar_select %p128, %s129, %s130
      %p134 = pneg %p128
      %p135 = scmp.eq.s32.totalorder %s16, 4
      %p136 = por %p134, %p135
      %p137 = scmp.ne.s32.totalorder %s129, %s132
      %p138 = scmp.eq.s32.totalorder %s16, 0
      %p139 = por %p137, %p138
      %p140 = scmp.ne.s32.totalorder %s129, %s132
      %p141 = scmp.eq.s32.totalorder %s21, 4
      %p142 = por %p140, %p141
      %p143 = scmp.ne.s32.totalorder %s132, %s133
      %p144 = scmp.eq.s32.totalorder %s21, 0
      %p145 = por %p143, %p144
      %p146 = scmp.ne.s32.totalorder %s132, %s133
      %p147 = scmp.eq.s32.totalorder %s22, 4
      %p148 = por %p146, %p147
      %p150 = scmp.ne.s32.totalorder %s133, %s149
      %p151 = scmp.eq.s32.totalorder %s22, 0
      %p152 = por %p150, %p151
      %p153 = scmp.le.s32.totalorder 1, %s16
      %p154 = scmp.lt.s32.totalorder %s16, 6
      %p155 = pnand %p153, %p154
      %p156 = pneg %p155
      // Predicated region
      $region9: #{_linear_call.1} parent=5 // pred_check
        _
      $region10: #{_linear_call.1} parent=5 // pred_check_branch
        %158 = sbr.rel (%p155) target = $region12
      $region11: #{_linear_call.1} parent=5 // pred_region
        %s159 = ssub.s32 %s16, 1
        // Predicated region
        $region13: #{_linear_call.1} parent=11 // pred_check
          %p160 = pneg %p117
        $region14: #{_linear_call.1} parent=11 // pred_check_branch
          %162 = sbr.rel (%p160) target = $region16
        $region15: #{_linear_call.1} parent=11 // pred_region
          %s163 = smul.u32 4, %s27
          %s165 = ssub.s32 64, 64
          %166 = vsyncadd [#allocation7], %s165
          %s167 = smul.addr %s163, 16
          %s168 = scalar_lea.hbm %s2, %s167
          %s170 = sshll.u32 [#allocation8], 4
          %s171 = int_to_ptr.vmem [resolvable:$true] %s170
          %173 = dma.hbm_to_vmem [thread:$0]  %s168, 64, %s171, [#allocation7]
        $region16: #{_linear_call.1} parent=11 // pred_fallthru
          _
      $region12: #{_linear_call.1} parent=5 // pred_fallthru
        _
      %p174 = scmp.lt.s32.totalorder %s16, 5
      // Predicated region
      $region17: #{_linear_call.1} parent=5 // pred_check
        %p175 = pneg %p174
      $region18: #{_linear_call.1} parent=5 // pred_check_branch
        %177 = sbr.rel (%p175) target = $region20
      $region19: #{_linear_call.1} parent=5 // pred_region
        // Predicated region
        $region21: #{_linear_call.1} parent=19 // pred_check
          %p178 = pneg %p57
        $region22: #{_linear_call.1} parent=19 // pred_check_branch
          %180 = sbr.rel (%p178) target = $region24
        $region23: #{_linear_call.1} parent=19 // pred_region
          %s181 = sand.u32 %s47, 1
          %s182 = scalar_lea.sflag [#allocation4], %s181
          %s183 = sand.u32 %s47, 1
          %s184 = smul.addr %s183, 32
          %s185 = scalar_lea.vmem [#allocation3], %s184
          %s186 = smul.u32 2, %s23
          %s187 = smul.u32 4, %s25
          %s189 = ssub.s32 512, 512
          %190 = vsyncadd %s182, %s189
          %s191 = smul.addr %s186, 20
          %s192 = sadd.s32 %s187, %s191
          %s193 = smul.addr %s192, 64
          %s194 = scalar_lea.hbm %s0, %s193
          %s195 = sshll.u32 %s185, 4
          %s196 = int_to_ptr.vmem [resolvable:$true] %s195
          %201 = dma.hbm_to_vmem [thread:$0]  %s194, 512, %s196, %s182, 1280, 256, 16
        $region24: #{_linear_call.1} parent=19 // pred_fallthru
          _
        // Predicated region
        $region25: #{_linear_call.1} parent=19 // pred_check
          %p202 = pneg %p85
        $region26: #{_linear_call.1} parent=19 // pred_check_branch
          %204 = sbr.rel (%p202) target = $region28
        $region27: #{_linear_call.1} parent=19 // pred_region
          %s205 = sand.u32 %s16, 1
          %s206 = scalar_lea.sflag [#allocation7], %s205
          %s207 = sand.u32 %s75, 1
          %s208 = smul.addr %s207, 1024
          %s209 = scalar_lea.vmem [#allocation6], %s208
          %s210 = smul.u32 64, %s25
          %s211 = smul.u32 4, %s24
          %s213 = ssub.s32 16384, 16384
          %214 = vsyncadd %s206, %s213
          %s215 = smul.addr %s210, 4
          %s216 = sadd.s32 %s211, %s215
          %s217 = smul.addr %s216, 64
          %s218 = scalar_lea.hbm %s1, %s217
          %s219 = sshll.u32 %s209, 4
          %s220 = int_to_ptr.vmem [resolvable:$true] %s219
          %225 = dma.hbm_to_vmem [thread:$0]  %s218, 16384, %s220, %s206, 256, 256, 16
        $region28: #{_linear_call.1} parent=19 // pred_fallthru
          _
      $region20: #{_linear_call.1} parent=5 // pred_fallthru
        _
      %p226 = scmp.le.s32.totalorder 1, %s16
      %p227 = scmp.lt.s32.totalorder %s16, 6
      %p228 = pnand %p226, %p227
      %p229 = pneg %p228
      // Predicated region
      $region29: #{_linear_call.1} parent=5 // pred_check
        _
      $region30: #{_linear_call.1} parent=5 // pred_check_branch
        %231 = sbr.rel (%p228) target = $region32
      $region31: #{_linear_call.1} parent=5 // pred_region
        %s232 = ssub.s32 %s16, 1
        %s233 = sand.u32 %s50, 1
        %s234 = scalar_lea.sflag [#allocation4], %s233
        %s235 = sand.u32 %s50, 1
        %s236 = smul.addr %s235, 32
        %s237 = scalar_lea.vmem [#allocation3], %s236
        // Predicated region
        $region33: #{_linear_call.1} parent=31 // pred_check
          %p238 = pneg %p63
        $region34: #{_linear_call.1} parent=31 // pred_check_branch
          %240 = sbr.rel (%p238) target = $region36
        $region35: #{_linear_call.1} parent=31 // pred_region
          %241 = dma.done %s234, 512
        $region36: #{_linear_call.1} parent=31 // pred_fallthru
          _
        %s242 = sand.u32 %s21, 1
        %s243 = scalar_lea.sflag [#allocation7], %s242
        %s244 = sand.u32 %s78, 1
        %s245 = smul.addr %s244, 1024
        %s246 = scalar_lea.vmem [#allocation6], %s245
        // Predicated region
        $region37: #{_linear_call.1} parent=31 // pred_check
          %p247 = pneg %p91
        $region38: #{_linear_call.1} parent=31 // pred_check_branch
          %249 = sbr.rel (%p247) target = $region40
        $region39: #{_linear_call.1} parent=31 // pred_region
          %250 = dma.done %s243, 16384
        $region40: #{_linear_call.1} parent=31 // pred_fallthru
          _
        // Predicated region
        $region41: #{_linear_call.1} parent=31 // pred_check
          %p251 = pneg %p117
        $region42: #{_linear_call.1} parent=31 // pred_check_branch
          %253 = sbr.rel (%p251) target = $region44
        $region43: #{_linear_call.1} parent=31 // pred_region
          %254 = dma.done [#allocation7], 64
        $region44: #{_linear_call.1} parent=31 // pred_fallthru
          _
        %s255 = sand.u32 %s50, 1
        %s256 = scalar_lea.sflag [#allocation4], %s255
        %s257 = sand.u32 %s50, 1
        %s258 = smul.addr %s257, 32
        %s259 = scalar_lea.vmem [#allocation3], %s258
        %p260 = pneg %p63
        %p261 = pneg %p60
        %s262 = sand.u32 %s21, 1
        %s263 = scalar_lea.sflag [#allocation7], %s262
        %s264 = sand.u32 %s78, 1
        %s265 = smul.addr %s264, 1024
        %s266 = scalar_lea.vmem [#allocation6], %s265
        %p267 = pneg %p91
        %p268 = pneg %p88
        %p269 = pneg %p117
        %p270 = pneg %p114
        %p271 = pneg %p145
        %p272 = pneg %p142
        %s273 = smul.u32 2, %s26
        %s274 = smul.u32 4, %s28
        %s275 = smul.u32 64, %s28
        %s276 = smul.u32 4, %s27
        %s277 = smul.u32 4, %s27
        %s278 = smul.u32 2, %s26
        %s279 = smul.u32 4, %s27
        %p280 = scmp.eq.s32.totalorder %s28, 0
        // Predicated region
        $region45: #{_linear_call.1} parent=31 // pred_check
          %p281 = pneg %p280
        $region46: #{_linear_call.1} parent=31 // pred_check_branch
          %283 = sbr.rel (%p281) target = $region48
        $region47: #{_linear_call.1} parent=31 // pred_region
          %v284 = vld [vmem:[#allocation8] sm:$0xf]
          %v286 = vlaneseq
          %v287 = vshrl.u32 %v286, 7
          %v288 = vsub.s32 0, %v287
          %v289 = vrot.slane %v284, %v288
          %v290 = vlaneseq
          %v291 = vshrl.u32 %v290, 7
          %v292 = vsub.s32 1, %v291
          %v293 = vrot.slane %v284, %v292
          %v294 = vlaneseq
          %v295 = vshrl.u32 %v294, 7
          %v296 = vsub.s32 2, %v295
          %v297 = vrot.slane %v284, %v296
          %v298 = vlaneseq
          %v299 = vshrl.u32 %v298, 7
          %v300 = vsub.s32 3, %v299
          %v301 = vrot.slane %v284, %v300
          %306 = vst [vmem:[#allocation2] sm:$0xff] %v289
          %307 = vst [vmem:[#allocation2 + $0x8] sm:$0xff] %v293
          %308 = vst [vmem:[#allocation2 + $0x10] sm:$0xff] %v297
          %309 = vst [vmem:[#allocation2 + $0x18] sm:$0xff] %v301
          %310 = vst [vmem:[#allocation2 + $0x20] sm:$0xff] %v289
          %311 = vst [vmem:[#allocation2 + $0x28] sm:$0xff] %v293
          %312 = vst [vmem:[#allocation2 + $0x30] sm:$0xff] %v297
          %313 = vst [vmem:[#allocation2 + $0x38] sm:$0xff] %v301
        $region48: #{_linear_call.1} parent=31 // pred_fallthru
          _
        %v314 = vld [vmem:[#allocation2] sm:$0xff]
        %v315 = vld [vmem:[#allocation2 + $0x8] sm:$0xff]
        %v316 = vld [vmem:[#allocation2 + $0x10] sm:$0xff]
        %v317 = vld [vmem:[#allocation2 + $0x18] sm:$0xff]
        %v318 = vld [vmem:[#allocation2 + $0x20] sm:$0xff]
        %v319 = vld [vmem:[#allocation2 + $0x28] sm:$0xff]
        %v320 = vld [vmem:[#allocation2 + $0x30] sm:$0xff]
        %v321 = vld [vmem:[#allocation2 + $0x38] sm:$0xff]
        %v322 = vld [vmem:[%s237] sm:$0xff]
        %v323 = vld [vmem:[%s237 + $0x8] sm:$0xff]
        %v324 = vld [vmem:[%s237 + $0x10] sm:$0xff]
        %v325 = vld [vmem:[%s237 + $0x18] sm:$0xff]
        %v326 = vld [vmem:[%s246] sm:$0xff]
        %v327 = vld [vmem:[%s246 + $0x8] sm:$0xff]
        %v328 = vld [vmem:[%s246 + $0x10] sm:$0xff]
        %v329 = vld [vmem:[%s246 + $0x18] sm:$0xff]
        %v330 = vld [vmem:[%s246 + $0x20] sm:$0xff]
        %v331 = vld [vmem:[%s246 + $0x28] sm:$0xff]
        %v332 = vld [vmem:[%s246 + $0x30] sm:$0xff]
        %v333 = vld [vmem:[%s246 + $0x38] sm:$0xff]
        %v334 = vld [vmem:[%s246 + $0x40] sm:$0xff]
        %v335 = vld [vmem:[%s246 + $0x48] sm:$0xff]
        %v336 = vld [vmem:[%s246 + $0x50] sm:$0xff]
        %v337 = vld [vmem:[%s246 + $0x58] sm:$0xff]
        %v338 = vld [vmem:[%s246 + $0x60] sm:$0xff]
        %v339 = vld [vmem:[%s246 + $0x68] sm:$0xff]
        %v340 = vld [vmem:[%s246 + $0x70] sm:$0xff]
        %v341 = vld [vmem:[%s246 + $0x78] sm:$0xff]
        %v342 = vld [vmem:[%s246 + $0x80] sm:$0xff]
        %v343 = vld [vmem:[%s246 + $0x88] sm:$0xff]
        %v344 = vld [vmem:[%s246 + $0x90] sm:$0xff]
        %v345 = vld [vmem:[%s246 + $0x98] sm:$0xff]
        %v346 = vld [vmem:[%s246 + $0xa0] sm:$0xff]
        %v347 = vld [vmem:[%s246 + $0xa8] sm:$0xff]
        %v348 = vld [vmem:[%s246 + $0xb0] sm:$0xff]
        %v349 = vld [vmem:[%s246 + $0xb8] sm:$0xff]
        %v350 = vld [vmem:[%s246 + $0xc0] sm:$0xff]
        %v351 = vld [vmem:[%s246 + $0xc8] sm:$0xff]
        %v352 = vld [vmem:[%s246 + $0xd0] sm:$0xff]
        %v353 = vld [vmem:[%s246 + $0xd8] sm:$0xff]
        %v354 = vld [vmem:[%s246 + $0xe0] sm:$0xff]
        %v355 = vld [vmem:[%s246 + $0xe8] sm:$0xff]
        %v356 = vld [vmem:[%s246 + $0xf0] sm:$0xff]
        %v357 = vld [vmem:[%s246 + $0xf8] sm:$0xff]
        %v358 = vld [vmem:[%s246 + $0x100] sm:$0xff]
        %v359 = vld [vmem:[%s246 + $0x108] sm:$0xff]
        %v360 = vld [vmem:[%s246 + $0x110] sm:$0xff]
        %v361 = vld [vmem:[%s246 + $0x118] sm:$0xff]
        %v362 = vld [vmem:[%s246 + $0x120] sm:$0xff]
        %v363 = vld [vmem:[%s246 + $0x128] sm:$0xff]
        %v364 = vld [vmem:[%s246 + $0x130] sm:$0xff]
        %v365 = vld [vmem:[%s246 + $0x138] sm:$0xff]
        %v366 = vld [vmem:[%s246 + $0x140] sm:$0xff]
        %v367 = vld [vmem:[%s246 + $0x148] sm:$0xff]
        %v368 = vld [vmem:[%s246 + $0x150] sm:$0xff]
        %v369 = vld [vmem:[%s246 + $0x158] sm:$0xff]
        %v370 = vld [vmem:[%s246 + $0x160] sm:$0xff]
        %v371 = vld [vmem:[%s246 + $0x168] sm:$0xff]
        %v372 = vld [vmem:[%s246 + $0x170] sm:$0xff]
        %v373 = vld [vmem:[%s246 + $0x178] sm:$0xff]
        %v374 = vld [vmem:[%s246 + $0x180] sm:$0xff]
        %v375 = vld [vmem:[%s246 + $0x188] sm:$0xff]
        %v376 = vld [vmem:[%s246 + $0x190] sm:$0xff]
        %v377 = vld [vmem:[%s246 + $0x198] sm:$0xff]
        %v378 = vld [vmem:[%s246 + $0x1a0] sm:$0xff]
        %v379 = vld [vmem:[%s246 + $0x1a8] sm:$0xff]
        %v380 = vld [vmem:[%s246 + $0x1b0] sm:$0xff]
        %v381 = vld [vmem:[%s246 + $0x1b8] sm:$0xff]
        %v382 = vld [vmem:[%s246 + $0x1c0] sm:$0xff]
        %v383 = vld [vmem:[%s246 + $0x1c8] sm:$0xff]
        %v384 = vld [vmem:[%s246 + $0x1d0] sm:$0xff]
        %v385 = vld [vmem:[%s246 + $0x1d8] sm:$0xff]
        %v386 = vld [vmem:[%s246 + $0x1e0] sm:$0xff]
        %v387 = vld [vmem:[%s246 + $0x1e8] sm:$0xff]
        %v388 = vld [vmem:[%s246 + $0x1f0] sm:$0xff]
        %v389 = vld [vmem:[%s246 + $0x1f8] sm:$0xff]
        %v390 = vld [vmem:[%s246 + $0x200] sm:$0xff]
        %v391 = vld [vmem:[%s246 + $0x208] sm:$0xff]
        %v392 = vld [vmem:[%s246 + $0x210] sm:$0xff]
        %v393 = vld [vmem:[%s246 + $0x218] sm:$0xff]
        %v394 = vld [vmem:[%s246 + $0x220] sm:$0xff]
        %v395 = vld [vmem:[%s246 + $0x228] sm:$0xff]
        %v396 = vld [vmem:[%s246 + $0x230] sm:$0xff]
        %v397 = vld [vmem:[%s246 + $0x238] sm:$0xff]
        %v398 = vld [vmem:[%s246 + $0x240] sm:$0xff]
        %v399 = vld [vmem:[%s246 + $0x248] sm:$0xff]
        %v400 = vld [vmem:[%s246 + $0x250] sm:$0xff]
        %v401 = vld [vmem:[%s246 + $0x258] sm:$0xff]
        %v402 = vld [vmem:[%s246 + $0x260] sm:$0xff]
        %v403 = vld [vmem:[%s246 + $0x268] sm:$0xff]
        %v404 = vld [vmem:[%s246 + $0x270] sm:$0xff]
        %v405 = vld [vmem:[%s246 + $0x278] sm:$0xff]
        %v406 = vld [vmem:[%s246 + $0x280] sm:$0xff]
        %v407 = vld [vmem:[%s246 + $0x288] sm:$0xff]
        %v408 = vld [vmem:[%s246 + $0x290] sm:$0xff]
        %v409 = vld [vmem:[%s246 + $0x298] sm:$0xff]
        %v410 = vld [vmem:[%s246 + $0x2a0] sm:$0xff]
        %v411 = vld [vmem:[%s246 + $0x2a8] sm:$0xff]
        %v412 = vld [vmem:[%s246 + $0x2b0] sm:$0xff]
        %v413 = vld [vmem:[%s246 + $0x2b8] sm:$0xff]
        %v414 = vld [vmem:[%s246 + $0x2c0] sm:$0xff]
        %v415 = vld [vmem:[%s246 + $0x2c8] sm:$0xff]
        %v416 = vld [vmem:[%s246 + $0x2d0] sm:$0xff]
        %v417 = vld [vmem:[%s246 + $0x2d8] sm:$0xff]
        %v418 = vld [vmem:[%s246 + $0x2e0] sm:$0xff]
        %v419 = vld [vmem:[%s246 + $0x2e8] sm:$0xff]
        %v420 = vld [vmem:[%s246 + $0x2f0] sm:$0xff]
        %v421 = vld [vmem:[%s246 + $0x2f8] sm:$0xff]
        %v422 = vld [vmem:[%s246 + $0x300] sm:$0xff]
        %v423 = vld [vmem:[%s246 + $0x308] sm:$0xff]
        %v424 = vld [vmem:[%s246 + $0x310] sm:$0xff]
        %v425 = vld [vmem:[%s246 + $0x318] sm:$0xff]
        %v426 = vld [vmem:[%s246 + $0x320] sm:$0xff]
        %v427 = vld [vmem:[%s246 + $0x328] sm:$0xff]
        %v428 = vld [vmem:[%s246 + $0x330] sm:$0xff]
        %v429 = vld [vmem:[%s246 + $0x338] sm:$0xff]
        %v430 = vld [vmem:[%s246 + $0x340] sm:$0xff]
        %v431 = vld [vmem:[%s246 + $0x348] sm:$0xff]
        %v432 = vld [vmem:[%s246 + $0x350] sm:$0xff]
        %v433 = vld [vmem:[%s246 + $0x358] sm:$0xff]
        %v434 = vld [vmem:[%s246 + $0x360] sm:$0xff]
        %v435 = vld [vmem:[%s246 + $0x368] sm:$0xff]
        %v436 = vld [vmem:[%s246 + $0x370] sm:$0xff]
        %v437 = vld [vmem:[%s246 + $0x378] sm:$0xff]
        %v438 = vld [vmem:[%s246 + $0x380] sm:$0xff]
        %v439 = vld [vmem:[%s246 + $0x388] sm:$0xff]
        %v440 = vld [vmem:[%s246 + $0x390] sm:$0xff]
        %v441 = vld [vmem:[%s246 + $0x398] sm:$0xff]
        %v442 = vld [vmem:[%s246 + $0x3a0] sm:$0xff]
        %v443 = vld [vmem:[%s246 + $0x3a8] sm:$0xff]
        %v444 = vld [vmem:[%s246 + $0x3b0] sm:$0xff]
        %v445 = vld [vmem:[%s246 + $0x3b8] sm:$0xff]
        %v446 = vld [vmem:[%s246 + $0x3c0] sm:$0xff]
        %v447 = vld [vmem:[%s246 + $0x3c8] sm:$0xff]
        %v448 = vld [vmem:[%s246 + $0x3d0] sm:$0xff]
        %v449 = vld [vmem:[%s246 + $0x3d8] sm:$0xff]
        %v450 = vld [vmem:[%s246 + $0x3e0] sm:$0xff]
        %v451 = vld [vmem:[%s246 + $0x3e8] sm:$0xff]
        %v452 = vld [vmem:[%s246 + $0x3f0] sm:$0xff]
        %v453 = vld [vmem:[%s246 + $0x3f8] sm:$0xff]
        %v458 = vunpack.c.l.b16 %v322
        %v459 = vunpack.c.h.b16 %v322
        %v460 = vunpack.c.l.b16 %v323
        %v461 = vunpack.c.h.b16 %v323
        %v462 = vunpack.c.l.b16 %v324
        %v463 = vunpack.c.h.b16 %v324
        %v464 = vunpack.c.l.b16 %v325
        %v465 = vunpack.c.h.b16 %v325
        %v466 = vpack.c.b16 %v462, %v458
        %v467 = vpack.c.b16 %v463, %v459
        %v468 = vpack.c.b16 %v464, %v460
        %v469 = vpack.c.b16 %v465, %v461
        %v602 = vunpack.c.l.b16 %v326
        %v603 = vunpack.c.h.b16 %v326
        %v604 = vunpack.c.l.b16 %v327
        %v605 = vunpack.c.h.b16 %v327
        %v606 = vunpack.c.l.b16 %v328
        %v607 = vunpack.c.h.b16 %v328
        %v608 = vunpack.c.l.b16 %v329
        %v609 = vunpack.c.h.b16 %v329
        %v610 = vunpack.c.l.b16 %v330
        %v611 = vunpack.c.h.b16 %v330
        %v612 = vunpack.c.l.b16 %v331
        %v613 = vunpack.c.h.b16 %v331
        %v614 = vunpack.c.l.b16 %v332
        %v615 = vunpack.c.h.b16 %v332
        %v616 = vunpack.c.l.b16 %v333
        %v617 = vunpack.c.h.b16 %v333
        %v618 = vunpack.c.l.b16 %v334
        %v619 = vunpack.c.h.b16 %v334
        %v620 = vunpack.c.l.b16 %v335
        %v621 = vunpack.c.h.b16 %v335
        %v622 = vunpack.c.l.b16 %v336
        %v623 = vunpack.c.h.b16 %v336
        %v624 = vunpack.c.l.b16 %v337
        %v625 = vunpack.c.h.b16 %v337
        %v626 = vunpack.c.l.b16 %v338
        %v627 = vunpack.c.h.b16 %v338
        %v628 = vunpack.c.l.b16 %v339
        %v629 = vunpack.c.h.b16 %v339
        %v630 = vunpack.c.l.b16 %v340
        %v631 = vunpack.c.h.b16 %v340
        %v632 = vunpack.c.l.b16 %v341
        %v633 = vunpack.c.h.b16 %v341
        %v634 = vunpack.c.l.b16 %v342
        %v635 = vunpack.c.h.b16 %v342
        %v636 = vunpack.c.l.b16 %v343
        %v637 = vunpack.c.h.b16 %v343
        %v638 = vunpack.c.l.b16 %v344
        %v639 = vunpack.c.h.b16 %v344
        %v640 = vunpack.c.l.b16 %v345
        %v641 = vunpack.c.h.b16 %v345
        %v642 = vunpack.c.l.b16 %v346
        %v643 = vunpack.c.h.b16 %v346
        %v644 = vunpack.c.l.b16 %v347
        %v645 = vunpack.c.h.b16 %v347
        %v646 = vunpack.c.l.b16 %v348
        %v647 = vunpack.c.h.b16 %v348
        %v648 = vunpack.c.l.b16 %v349
        %v649 = vunpack.c.h.b16 %v349
        %v650 = vunpack.c.l.b16 %v350
        %v651 = vunpack.c.h.b16 %v350
        %v652 = vunpack.c.l.b16 %v351
        %v653 = vunpack.c.h.b16 %v351
        %v654 = vunpack.c.l.b16 %v352
        %v655 = vunpack.c.h.b16 %v352
        %v656 = vunpack.c.l.b16 %v353
        %v657 = vunpack.c.h.b16 %v353
        %v658 = vunpack.c.l.b16 %v354
        %v659 = vunpack.c.h.b16 %v354
        %v660 = vunpack.c.l.b16 %v355
        %v661 = vunpack.c.h.b16 %v355
        %v662 = vunpack.c.l.b16 %v356
        %v663 = vunpack.c.h.b16 %v356
        %v664 = vunpack.c.l.b16 %v357
        %v665 = vunpack.c.h.b16 %v357
        %v666 = vunpack.c.l.b16 %v358
        %v667 = vunpack.c.h.b16 %v358
        %v668 = vunpack.c.l.b16 %v359
        %v669 = vunpack.c.h.b16 %v359
        %v670 = vunpack.c.l.b16 %v360
        %v671 = vunpack.c.h.b16 %v360
        %v672 = vunpack.c.l.b16 %v361
        %v673 = vunpack.c.h.b16 %v361
        %v674 = vunpack.c.l.b16 %v362
        %v675 = vunpack.c.h.b16 %v362
        %v676 = vunpack.c.l.b16 %v363
        %v677 = vunpack.c.h.b16 %v363
        %v678 = vunpack.c.l.b16 %v364
        %v679 = vunpack.c.h.b16 %v364
        %v680 = vunpack.c.l.b16 %v365
        %v681 = vunpack.c.h.b16 %v365
        %v682 = vunpack.c.l.b16 %v366
        %v683 = vunpack.c.h.b16 %v366
        %v684 = vunpack.c.l.b16 %v367
        %v685 = vunpack.c.h.b16 %v367
        %v686 = vunpack.c.l.b16 %v368
        %v687 = vunpack.c.h.b16 %v368
        %v688 = vunpack.c.l.b16 %v369
        %v689 = vunpack.c.h.b16 %v369
        %v690 = vunpack.c.l.b16 %v370
        %v691 = vunpack.c.h.b16 %v370
        %v692 = vunpack.c.l.b16 %v371
        %v693 = vunpack.c.h.b16 %v371
        %v694 = vunpack.c.l.b16 %v372
        %v695 = vunpack.c.h.b16 %v372
        %v696 = vunpack.c.l.b16 %v373
        %v697 = vunpack.c.h.b16 %v373
        %v698 = vunpack.c.l.b16 %v374
        %v699 = vunpack.c.h.b16 %v374
        %v700 = vunpack.c.l.b16 %v375
        %v701 = vunpack.c.h.b16 %v375
        %v702 = vunpack.c.l.b16 %v376
        %v703 = vunpack.c.h.b16 %v376
        %v704 = vunpack.c.l.b16 %v377
        %v705 = vunpack.c.h.b16 %v377
        %v706 = vunpack.c.l.b16 %v378
        %v707 = vunpack.c.h.b16 %v378
        %v708 = vunpack.c.l.b16 %v379
        %v709 = vunpack.c.h.b16 %v379
        %v710 = vunpack.c.l.b16 %v380
        %v711 = vunpack.c.h.b16 %v380
        %v712 = vunpack.c.l.b16 %v381
        %v713 = vunpack.c.h.b16 %v381
        %v714 = vunpack.c.l.b16 %v382
        %v715 = vunpack.c.h.b16 %v382
        %v716 = vunpack.c.l.b16 %v383
        %v717 = vunpack.c.h.b16 %v383
        %v718 = vunpack.c.l.b16 %v384
        %v719 = vunpack.c.h.b16 %v384
        %v720 = vunpack.c.l.b16 %v385
        %v721 = vunpack.c.h.b16 %v385
        %v722 = vunpack.c.l.b16 %v386
        %v723 = vunpack.c.h.b16 %v386
        %v724 = vunpack.c.l.b16 %v387
        %v725 = vunpack.c.h.b16 %v387
        %v726 = vunpack.c.l.b16 %v388
        %v727 = vunpack.c.h.b16 %v388
        %v728 = vunpack.c.l.b16 %v389
        %v729 = vunpack.c.h.b16 %v389
        %v730 = vunpack.c.l.b16 %v390
        %v731 = vunpack.c.h.b16 %v390
        %v732 = vunpack.c.l.b16 %v391
        %v733 = vunpack.c.h.b16 %v391
        %v734 = vunpack.c.l.b16 %v392
        %v735 = vunpack.c.h.b16 %v392
        %v736 = vunpack.c.l.b16 %v393
        %v737 = vunpack.c.h.b16 %v393
        %v738 = vunpack.c.l.b16 %v394
        %v739 = vunpack.c.h.b16 %v394
        %v740 = vunpack.c.l.b16 %v395
        %v741 = vunpack.c.h.b16 %v395
        %v742 = vunpack.c.l.b16 %v396
        %v743 = vunpack.c.h.b16 %v396
        %v744 = vunpack.c.l.b16 %v397
        %v745 = vunpack.c.h.b16 %v397
        %v746 = vunpack.c.l.b16 %v398
        %v747 = vunpack.c.h.b16 %v398
        %v748 = vunpack.c.l.b16 %v399
        %v749 = vunpack.c.h.b16 %v399
        %v750 = vunpack.c.l.b16 %v400
        %v751 = vunpack.c.h.b16 %v400
        %v752 = vunpack.c.l.b16 %v401
        %v753 = vunpack.c.h.b16 %v401
        %v754 = vunpack.c.l.b16 %v402
        %v755 = vunpack.c.h.b16 %v402
        %v756 = vunpack.c.l.b16 %v403
        %v757 = vunpack.c.h.b16 %v403
        %v758 = vunpack.c.l.b16 %v404
        %v759 = vunpack.c.h.b16 %v404
        %v760 = vunpack.c.l.b16 %v405
        %v761 = vunpack.c.h.b16 %v405
        %v762 = vunpack.c.l.b16 %v406
        %v763 = vunpack.c.h.b16 %v406
        %v764 = vunpack.c.l.b16 %v407
        %v765 = vunpack.c.h.b16 %v407
        %v766 = vunpack.c.l.b16 %v408
        %v767 = vunpack.c.h.b16 %v408
        %v768 = vunpack.c.l.b16 %v409
        %v769 = vunpack.c.h.b16 %v409
        %v770 = vunpack.c.l.b16 %v410
        %v771 = vunpack.c.h.b16 %v410
        %v772 = vunpack.c.l.b16 %v411
        %v773 = vunpack.c.h.b16 %v411
        %v774 = vunpack.c.l.b16 %v412
        %v775 = vunpack.c.h.b16 %v412
        %v776 = vunpack.c.l.b16 %v413
        %v777 = vunpack.c.h.b16 %v413
        %v778 = vunpack.c.l.b16 %v414
        %v779 = vunpack.c.h.b16 %v414
        %v780 = vunpack.c.l.b16 %v415
        %v781 = vunpack.c.h.b16 %v415
        %v782 = vunpack.c.l.b16 %v416
        %v783 = vunpack.c.h.b16 %v416
        %v784 = vunpack.c.l.b16 %v417
        %v785 = vunpack.c.h.b16 %v417
        %v786 = vunpack.c.l.b16 %v418
        %v787 = vunpack.c.h.b16 %v418
        %v788 = vunpack.c.l.b16 %v419
        %v789 = vunpack.c.h.b16 %v419
        %v790 = vunpack.c.l.b16 %v420
        %v791 = vunpack.c.h.b16 %v420
        %v792 = vunpack.c.l.b16 %v421
        %v793 = vunpack.c.h.b16 %v421
        %v794 = vunpack.c.l.b16 %v422
        %v795 = vunpack.c.h.b16 %v422
        %v796 = vunpack.c.l.b16 %v423
        %v797 = vunpack.c.h.b16 %v423
        %v798 = vunpack.c.l.b16 %v424
        %v799 = vunpack.c.h.b16 %v424
        %v800 = vunpack.c.l.b16 %v425
        %v801 = vunpack.c.h.b16 %v425
        %v802 = vunpack.c.l.b16 %v426
        %v803 = vunpack.c.h.b16 %v426
        %v804 = vunpack.c.l.b16 %v427
        %v805 = vunpack.c.h.b16 %v427
        %v806 = vunpack.c.l.b16 %v428
        %v807 = vunpack.c.h.b16 %v428
        %v808 = vunpack.c.l.b16 %v429
        %v809 = vunpack.c.h.b16 %v429
        %v810 = vunpack.c.l.b16 %v430
        %v811 = vunpack.c.h.b16 %v430
        %v812 = vunpack.c.l.b16 %v431
        %v813 = vunpack.c.h.b16 %v431
        %v814 = vunpack.c.l.b16 %v432
        %v815 = vunpack.c.h.b16 %v432
        %v816 = vunpack.c.l.b16 %v433
        %v817 = vunpack.c.h.b16 %v433
        %v818 = vunpack.c.l.b16 %v434
        %v819 = vunpack.c.h.b16 %v434
        %v820 = vunpack.c.l.b16 %v435
        %v821 = vunpack.c.h.b16 %v435
        %v822 = vunpack.c.l.b16 %v436
        %v823 = vunpack.c.h.b16 %v436
        %v824 = vunpack.c.l.b16 %v437
        %v825 = vunpack.c.h.b16 %v437
        %v826 = vunpack.c.l.b16 %v438
        %v827 = vunpack.c.h.b16 %v438
        %v828 = vunpack.c.l.b16 %v439
        %v829 = vunpack.c.h.b16 %v439
        %v830 = vunpack.c.l.b16 %v440
        %v831 = vunpack.c.h.b16 %v440
        %v832 = vunpack.c.l.b16 %v441
        %v833 = vunpack.c.h.b16 %v441
        %v834 = vunpack.c.l.b16 %v442
        %v835 = vunpack.c.h.b16 %v442
        %v836 = vunpack.c.l.b16 %v443
        %v837 = vunpack.c.h.b16 %v443
        %v838 = vunpack.c.l.b16 %v444
        %v839 = vunpack.c.h.b16 %v444
        %v840 = vunpack.c.l.b16 %v445
        %v841 = vunpack.c.h.b16 %v445
        %v842 = vunpack.c.l.b16 %v446
        %v843 = vunpack.c.h.b16 %v446
        %v844 = vunpack.c.l.b16 %v447
        %v845 = vunpack.c.h.b16 %v447
        %v846 = vunpack.c.l.b16 %v448
        %v847 = vunpack.c.h.b16 %v448
        %v848 = vunpack.c.l.b16 %v449
        %v849 = vunpack.c.h.b16 %v449
        %v850 = vunpack.c.l.b16 %v450
        %v851 = vunpack.c.h.b16 %v450
        %v852 = vunpack.c.l.b16 %v451
        %v853 = vunpack.c.h.b16 %v451
        %v854 = vunpack.c.l.b16 %v452
        %v855 = vunpack.c.h.b16 %v452
        %v856 = vunpack.c.l.b16 %v453
        %v857 = vunpack.c.h.b16 %v453
        %v858 = vpack.c.b16 %v606, %v602
        %v859 = vpack.c.b16 %v607, %v603
        %v860 = vpack.c.b16 %v608, %v604
        %v861 = vpack.c.b16 %v609, %v605
        %v862 = vpack.c.b16 %v614, %v610
        %v863 = vpack.c.b16 %v615, %v611
        %v864 = vpack.c.b16 %v616, %v612
        %v865 = vpack.c.b16 %v617, %v613
        %v866 = vpack.c.b16 %v622, %v618
        %v867 = vpack.c.b16 %v623, %v619
        %v868 = vpack.c.b16 %v624, %v620
        %v869 = vpack.c.b16 %v625, %v621
        %v870 = vpack.c.b16 %v630, %v626
        %v871 = vpack.c.b16 %v631, %v627
        %v872 = vpack.c.b16 %v632, %v628
        %v873 = vpack.c.b16 %v633, %v629
        %v874 = vpack.c.b16 %v638, %v634
        %v875 = vpack.c.b16 %v639, %v635
        %v876 = vpack.c.b16 %v640, %v636
        %v877 = vpack.c.b16 %v641, %v637
        %v878 = vpack.c.b16 %v646, %v642
        %v879 = vpack.c.b16 %v647, %v643
        %v880 = vpack.c.b16 %v648, %v644
        %v881 = vpack.c.b16 %v649, %v645
        %v882 = vpack.c.b16 %v654, %v650
        %v883 = vpack.c.b16 %v655, %v651
        %v884 = vpack.c.b16 %v656, %v652
        %v885 = vpack.c.b16 %v657, %v653
        %v886 = vpack.c.b16 %v662, %v658
        %v887 = vpack.c.b16 %v663, %v659
        %v888 = vpack.c.b16 %v664, %v660
        %v889 = vpack.c.b16 %v665, %v661
        %v890 = vpack.c.b16 %v670, %v666
        %v891 = vpack.c.b16 %v671, %v667
        %v892 = vpack.c.b16 %v672, %v668
        %v893 = vpack.c.b16 %v673, %v669
        %v894 = vpack.c.b16 %v678, %v674
        %v895 = vpack.c.b16 %v679, %v675
        %v896 = vpack.c.b16 %v680, %v676
        %v897 = vpack.c.b16 %v681, %v677
        %v898 = vpack.c.b16 %v686, %v682
        %v899 = vpack.c.b16 %v687, %v683
        %v900 = vpack.c.b16 %v688, %v684
        %v901 = vpack.c.b16 %v689, %v685
        %v902 = vpack.c.b16 %v694, %v690
        %v903 = vpack.c.b16 %v695, %v691
        %v904 = vpack.c.b16 %v696, %v692
        %v905 = vpack.c.b16 %v697, %v693
        %v906 = vpack.c.b16 %v702, %v698
        %v907 = vpack.c.b16 %v703, %v699
        %v908 = vpack.c.b16 %v704, %v700
        %v909 = vpack.c.b16 %v705, %v701
        %v910 = vpack.c.b16 %v710, %v706
        %v911 = vpack.c.b16 %v711, %v707
        %v912 = vpack.c.b16 %v712, %v708
        %v913 = vpack.c.b16 %v713, %v709
        %v914 = vpack.c.b16 %v718, %v714
        %v915 = vpack.c.b16 %v719, %v715
        %v916 = vpack.c.b16 %v720, %v716
        %v917 = vpack.c.b16 %v721, %v717
        %v918 = vpack.c.b16 %v726, %v722
        %v919 = vpack.c.b16 %v727, %v723
        %v920 = vpack.c.b16 %v728, %v724
        %v921 = vpack.c.b16 %v729, %v725
        %v922 = vpack.c.b16 %v734, %v730
        %v923 = vpack.c.b16 %v735, %v731
        %v924 = vpack.c.b16 %v736, %v732
        %v925 = vpack.c.b16 %v737, %v733
        %v926 = vpack.c.b16 %v742, %v738
        %v927 = vpack.c.b16 %v743, %v739
        %v928 = vpack.c.b16 %v744, %v740
        %v929 = vpack.c.b16 %v745, %v741
        %v930 = vpack.c.b16 %v750, %v746
        %v931 = vpack.c.b16 %v751, %v747
        %v932 = vpack.c.b16 %v752, %v748
        %v933 = vpack.c.b16 %v753, %v749
        %v934 = vpack.c.b16 %v758, %v754
        %v935 = vpack.c.b16 %v759, %v755
        %v936 = vpack.c.b16 %v760, %v756
        %v937 = vpack.c.b16 %v761, %v757
        %v938 = vpack.c.b16 %v766, %v762
        %v939 = vpack.c.b16 %v767, %v763
        %v940 = vpack.c.b16 %v768, %v764
        %v941 = vpack.c.b16 %v769, %v765
        %v942 = vpack.c.b16 %v774, %v770
        %v943 = vpack.c.b16 %v775, %v771
        %v944 = vpack.c.b16 %v776, %v772
        %v945 = vpack.c.b16 %v777, %v773
        %v946 = vpack.c.b16 %v782, %v778
        %v947 = vpack.c.b16 %v783, %v779
        %v948 = vpack.c.b16 %v784, %v780
        %v949 = vpack.c.b16 %v785, %v781
        %v950 = vpack.c.b16 %v790, %v786
        %v951 = vpack.c.b16 %v791, %v787
        %v952 = vpack.c.b16 %v792, %v788
        %v953 = vpack.c.b16 %v793, %v789
        %v954 = vpack.c.b16 %v798, %v794
        %v955 = vpack.c.b16 %v799, %v795
        %v956 = vpack.c.b16 %v800, %v796
        %v957 = vpack.c.b16 %v801, %v797
        %v958 = vpack.c.b16 %v806, %v802
        %v959 = vpack.c.b16 %v807, %v803
        %v960 = vpack.c.b16 %v808, %v804
        %v961 = vpack.c.b16 %v809, %v805
        %v962 = vpack.c.b16 %v814, %v810
        %v963 = vpack.c.b16 %v815, %v811
        %v964 = vpack.c.b16 %v816, %v812
        %v965 = vpack.c.b16 %v817, %v813
        %v966 = vpack.c.b16 %v822, %v818
        %v967 = vpack.c.b16 %v823, %v819
        %v968 = vpack.c.b16 %v824, %v820
        %v969 = vpack.c.b16 %v825, %v821
        %v970 = vpack.c.b16 %v830, %v826
        %v971 = vpack.c.b16 %v831, %v827
        %v972 = vpack.c.b16 %v832, %v828
        %v973 = vpack.c.b16 %v833, %v829
        %v974 = vpack.c.b16 %v838, %v834
        %v975 = vpack.c.b16 %v839, %v835
        %v976 = vpack.c.b16 %v840, %v836
        %v977 = vpack.c.b16 %v841, %v837
        %v978 = vpack.c.b16 %v846, %v842
        %v979 = vpack.c.b16 %v847, %v843
        %v980 = vpack.c.b16 %v848, %v844
        %v981 = vpack.c.b16 %v849, %v845
        %v982 = vpack.c.b16 %v854, %v850
        %v983 = vpack.c.b16 %v855, %v851
        %v984 = vpack.c.b16 %v856, %v852
        %v985 = vpack.c.b16 %v857, %v853
        %1114 = vmatprep.subr.bf16.mxu0 %v859
        %1115 = vmatpush1.bf16.msra.mxu0 %v858
        %1116 = vmatprep.subr.bf16.mxu0 %v863
        %1117 = vmatpush1.bf16.msra.mxu0 %v862
        %1118 = vmatprep.subr.bf16.mxu0 %v867
        %1119 = vmatpush1.bf16.msra.mxu0 %v866
        %1120 = vmatprep.subr.bf16.mxu0 %v871
        %1121 = vmatpush1.bf16.msra.mxu0 %v870
        %1122 = vmatprep.subr.bf16.mxu0 %v875
        %1123 = vmatpush1.bf16.msra.mxu0 %v874
        %1124 = vmatprep.subr.bf16.mxu0 %v879
        %1125 = vmatpush1.bf16.msra.mxu0 %v878
        %1126 = vmatprep.subr.bf16.mxu0 %v883
        %1127 = vmatpush1.bf16.msra.mxu0 %v882
        %1128 = vmatprep.subr.bf16.mxu0 %v887
        %1129 = vmatpush1.bf16.msra.mxu0 %v886
        %1130 = vmatprep.subr.bf16.mxu0 %v891
        %1131 = vmatpush1.bf16.msra.mxu0 %v890
        %1132 = vmatprep.subr.bf16.mxu0 %v895
        %1133 = vmatpush1.bf16.msra.mxu0 %v894
        %1134 = vmatprep.subr.bf16.mxu0 %v899
        %1135 = vmatpush1.bf16.msra.mxu0 %v898
        %1136 = vmatprep.subr.bf16.mxu0 %v903
        %1137 = vmatpush1.bf16.msra.mxu0 %v902
        %1138 = vmatprep.subr.bf16.mxu0 %v907
        %1139 = vmatpush1.bf16.msra.mxu0 %v906
        %1140 = vmatprep.subr.bf16.mxu0 %v911
        %1141 = vmatpush1.bf16.msra.mxu0 %v910
        %1142 = vmatprep.subr.bf16.mxu0 %v915
        %1143 = vmatpush1.bf16.msra.mxu0 %v914
        %1144 = vmatprep.subr.bf16.mxu0 %v919
        %1145 = vmatpush1.bf16.msra.mxu0 %v918
        %1146 = vmatprep.mubr.bf16.mxu0 %v467
        %1147 = vmatmul.mubr.bf16.gmra.mrb[0].mxu0 %v466
        %v1148 = vpop.f32.mrb[0].mxu0
        %v1149 = vadd.f32 0.0, %v1148
        %v1150 = vpop.f32.mrb[0].mxu0
        %v1151 = vadd.f32 0.0, %v1150
        %v1152 = vpop.f32.mrb[0].mxu0
        %v1153 = vadd.f32 0.0, %v1152
        %v1154 = vpop.f32.mrb[0].mxu0
        %v1155 = vadd.f32 0.0, %v1154
        %1156 = vdwg.mxu0
        %1157 = vmatprep.subr.bf16.mxu0 %v923
        %1158 = vmatpush1.bf16.msra.mxu0 %v922
        %1159 = vmatprep.subr.bf16.mxu0 %v927
        %1160 = vmatpush1.bf16.msra.mxu0 %v926
        %1161 = vmatprep.subr.bf16.mxu0 %v931
        %1162 = vmatpush1.bf16.msra.mxu0 %v930
        %1163 = vmatprep.subr.bf16.mxu0 %v935
        %1164 = vmatpush1.bf16.msra.mxu0 %v934
        %1165 = vmatprep.subr.bf16.mxu0 %v939
        %1166 = vmatpush1.bf16.msra.mxu0 %v938
        %1167 = vmatprep.subr.bf16.mxu0 %v943
        %1168 = vmatpush1.bf16.msra.mxu0 %v942
        %1169 = vmatprep.subr.bf16.mxu0 %v947
        %1170 = vmatpush1.bf16.msra.mxu0 %v946
        %1171 = vmatprep.subr.bf16.mxu0 %v951
        %1172 = vmatpush1.bf16.msra.mxu0 %v950
        %1173 = vmatprep.subr.bf16.mxu0 %v955
        %1174 = vmatpush1.bf16.msra.mxu0 %v954
        %1175 = vmatprep.subr.bf16.mxu0 %v959
        %1176 = vmatpush1.bf16.msra.mxu0 %v958
        %1177 = vmatprep.subr.bf16.mxu0 %v963
        %1178 = vmatpush1.bf16.msra.mxu0 %v962
        %1179 = vmatprep.subr.bf16.mxu0 %v967
        %1180 = vmatpush1.bf16.msra.mxu0 %v966
        %1181 = vmatprep.subr.bf16.mxu0 %v971
        %1182 = vmatpush1.bf16.msra.mxu0 %v970
        %1183 = vmatprep.subr.bf16.mxu0 %v975
        %1184 = vmatpush1.bf16.msra.mxu0 %v974
        %1185 = vmatprep.subr.bf16.mxu0 %v979
        %1186 = vmatpush1.bf16.msra.mxu0 %v978
        %1187 = vmatprep.subr.bf16.mxu0 %v983
        %1188 = vmatpush1.bf16.msra.mxu0 %v982
        %1189 = vmatprep.mubr.bf16.mxu0 %v469
        %1190 = vmatmul.mubr.bf16.gmra.mrb[0].mxu0 %v468
        %v1191 = vpop.f32.mrb[0].mxu0
        %v1192 = vadd.f32 %v1149, %v1191
        %v1193 = vpop.f32.mrb[0].mxu0
        %v1194 = vadd.f32 %v1151, %v1193
        %v1195 = vpop.f32.mrb[0].mxu0
        %v1196 = vadd.f32 %v1153, %v1195
        %v1197 = vpop.f32.mrb[0].mxu0
        %v1198 = vadd.f32 %v1155, %v1197
        %1199 = vdwg.mxu0
        %1200 = vmatprep.subr.bf16.mxu0 %v861
        %1201 = vmatpush1.bf16.msra.mxu0 %v860
        %1202 = vmatprep.subr.bf16.mxu0 %v865
        %1203 = vmatpush1.bf16.msra.mxu0 %v864
        %1204 = vmatprep.subr.bf16.mxu0 %v869
        %1205 = vmatpush1.bf16.msra.mxu0 %v868
        %1206 = vmatprep.subr.bf16.mxu0 %v873
        %1207 = vmatpush1.bf16.msra.mxu0 %v872
        %1208 = vmatprep.subr.bf16.mxu0 %v877
        %1209 = vmatpush1.bf16.msra.mxu0 %v876
        %1210 = vmatprep.subr.bf16.mxu0 %v881
        %1211 = vmatpush1.bf16.msra.mxu0 %v880
        %1212 = vmatprep.subr.bf16.mxu0 %v885
        %1213 = vmatpush1.bf16.msra.mxu0 %v884
        %1214 = vmatprep.subr.bf16.mxu0 %v889
        %1215 = vmatpush1.bf16.msra.mxu0 %v888
        %1216 = vmatprep.subr.bf16.mxu0 %v893
        %1217 = vmatpush1.bf16.msra.mxu0 %v892
        %1218 = vmatprep.subr.bf16.mxu0 %v897
        %1219 = vmatpush1.bf16.msra.mxu0 %v896
        %1220 = vmatprep.subr.bf16.mxu0 %v901
        %1221 = vmatpush1.bf16.msra.mxu0 %v900
        %1222 = vmatprep.subr.bf16.mxu0 %v905
        %1223 = vmatpush1.bf16.msra.mxu0 %v904
        %1224 = vmatprep.subr.bf16.mxu0 %v909
        %1225 = vmatpush1.bf16.msra.mxu0 %v908
        %1226 = vmatprep.subr.bf16.mxu0 %v913
        %1227 = vmatpush1.bf16.msra.mxu0 %v912
        %1228 = vmatprep.subr.bf16.mxu0 %v917
        %1229 = vmatpush1.bf16.msra.mxu0 %v916
        %1230 = vmatprep.subr.bf16.mxu0 %v921
        %1231 = vmatpush1.bf16.msra.mxu0 %v920
        %1232 = vmatprep.mubr.bf16.mxu0 %v467
        %1233 = vmatmul.mubr.bf16.gmra.mrb[0].mxu0 %v466
        %v1234 = vpop.f32.mrb[0].mxu0
        %v1235 = vadd.f32 0.0, %v1234
        %v1236 = vpop.f32.mrb[0].mxu0
        %v1237 = vadd.f32 0.0, %v1236
        %v1238 = vpop.f32.mrb[0].mxu0
        %v1239 = vadd.f32 0.0, %v1238
        %v1240 = vpop.f32.mrb[0].mxu0
        %v1241 = vadd.f32 0.0, %v1240
        %1242 = vdwg.mxu0
        %1243 = vmatprep.subr.bf16.mxu0 %v925
        %1244 = vmatpush1.bf16.msra.mxu0 %v924
        %1245 = vmatprep.subr.bf16.mxu0 %v929
        %1246 = vmatpush1.bf16.msra.mxu0 %v928
        %1247 = vmatprep.subr.bf16.mxu0 %v933
        %1248 = vmatpush1.bf16.msra.mxu0 %v932
        %1249 = vmatprep.subr.bf16.mxu0 %v937
        %1250 = vmatpush1.bf16.msra.mxu0 %v936
        %1251 = vmatprep.subr.bf16.mxu0 %v941
        %1252 = vmatpush1.bf16.msra.mxu0 %v940
        %1253 = vmatprep.subr.bf16.mxu0 %v945
        %1254 = vmatpush1.bf16.msra.mxu0 %v944
        %1255 = vmatprep.subr.bf16.mxu0 %v949
        %1256 = vmatpush1.bf16.msra.mxu0 %v948
        %1257 = vmatprep.subr.bf16.mxu0 %v953
        %1258 = vmatpush1.bf16.msra.mxu0 %v952
        %1259 = vmatprep.subr.bf16.mxu0 %v957
        %1260 = vmatpush1.bf16.msra.mxu0 %v956
        %1261 = vmatprep.subr.bf16.mxu0 %v961
        %1262 = vmatpush1.bf16.msra.mxu0 %v960
        %1263 = vmatprep.subr.bf16.mxu0 %v965
        %1264 = vmatpush1.bf16.msra.mxu0 %v964
        %1265 = vmatprep.subr.bf16.mxu0 %v969
        %1266 = vmatpush1.bf16.msra.mxu0 %v968
        %1267 = vmatprep.subr.bf16.mxu0 %v973
        %1268 = vmatpush1.bf16.msra.mxu0 %v972
        %1269 = vmatprep.subr.bf16.mxu0 %v977
        %1270 = vmatpush1.bf16.msra.mxu0 %v976
        %1271 = vmatprep.subr.bf16.mxu0 %v981
        %1272 = vmatpush1.bf16.msra.mxu0 %v980
        %1273 = vmatprep.subr.bf16.mxu0 %v985
        %1274 = vmatpush1.bf16.msra.mxu0 %v984
        %1275 = vmatprep.mubr.bf16.mxu0 %v469
        %1276 = vmatmul.mubr.bf16.gmra.mrb[0].mxu0 %v468
        %v1277 = vpop.f32.mrb[0].mxu0
        %v1278 = vadd.f32 %v1235, %v1277
        %v1279 = vpop.f32.mrb[0].mxu0
        %v1280 = vadd.f32 %v1237, %v1279
        %v1281 = vpop.f32.mrb[0].mxu0
        %v1282 = vadd.f32 %v1239, %v1281
        %v1283 = vpop.f32.mrb[0].mxu0
        %v1284 = vadd.f32 %v1241, %v1283
        %1285 = vdwg.mxu0
        %v1286 = vadd.f32 %v314, %v1192
        %v1287 = vadd.f32 %v315, %v1194
        %v1288 = vadd.f32 %v316, %v1278
        %v1289 = vadd.f32 %v317, %v1280
        %v1290 = vadd.f32 %v318, %v1196
        %v1291 = vadd.f32 %v319, %v1198
        %v1292 = vadd.f32 %v320, %v1282
        %v1293 = vadd.f32 %v321, %v1284
        %1294 = vst [vmem:[#allocation2] sm:$0xff] %v1286
        %1295 = vst [vmem:[#allocation2 + $0x8] sm:$0xff] %v1287
        %1296 = vst [vmem:[#allocation2 + $0x10] sm:$0xff] %v1288
        %1297 = vst [vmem:[#allocation2 + $0x18] sm:$0xff] %v1289
        %1298 = vst [vmem:[#allocation2 + $0x20] sm:$0xff] %v1290
        %1299 = vst [vmem:[#allocation2 + $0x28] sm:$0xff] %v1291
        %1300 = vst [vmem:[#allocation2 + $0x30] sm:$0xff] %v1292
        %1301 = vst [vmem:[#allocation2 + $0x38] sm:$0xff] %v1293
        %p1302 = scmp.eq.s32.totalorder %s28, 4
        // Predicated region
        $region49: #{_linear_call.1} parent=31 // pred_check
          %p1303 = pneg %p1302
        $region50: #{_linear_call.1} parent=31 // pred_check_branch
          %1305 = sbr.rel (%p1303) target = $region52
        $region51: #{_linear_call.1} parent=31 // pred_region
          %v1306 = vld [vmem:[#allocation2] sm:$0xff]
          %v1307 = vld [vmem:[#allocation2 + $0x8] sm:$0xff]
          %v1308 = vld [vmem:[#allocation2 + $0x10] sm:$0xff]
          %v1309 = vld [vmem:[#allocation2 + $0x18] sm:$0xff]
          %v1310 = vld [vmem:[#allocation2 + $0x20] sm:$0xff]
          %v1311 = vld [vmem:[#allocation2 + $0x28] sm:$0xff]
          %v1312 = vld [vmem:[#allocation2 + $0x30] sm:$0xff]
          %v1313 = vld [vmem:[#allocation2 + $0x38] sm:$0xff]
          %1314 = vst [vmem:[#allocation9] sm:$0xff] %v1306
          %1315 = vst [vmem:[#allocation9 + $0x8] sm:$0xff] %v1307
          %1316 = vst [vmem:[#allocation9 + $0x10] sm:$0xff] %v1308
          %1317 = vst [vmem:[#allocation9 + $0x18] sm:$0xff] %v1309
          %1318 = vst [vmem:[#allocation9 + $0x20] sm:$0xff] %v1310
          %1319 = vst [vmem:[#allocation9 + $0x28] sm:$0xff] %v1311
          %1320 = vst [vmem:[#allocation9 + $0x30] sm:$0xff] %v1312
          %1321 = vst [vmem:[#allocation9 + $0x38] sm:$0xff] %v1313
        $region52: #{_linear_call.1} parent=31 // pred_fallthru
          _
        // Predicated region
        $region53: #{_linear_call.1} parent=31 // pred_check
          %p1322 = pneg %p142
        $region54: #{_linear_call.1} parent=31 // pred_check_branch
          %1324 = sbr.rel (%p1322) target = $region56
        $region55: #{_linear_call.1} parent=31 // pred_region
          %s1325 = smul.u32 2, %s26
          %s1326 = smul.u32 4, %s27
          %s1328 = ssub.s32 1024, 1024
          %1329 = vsyncadd [#allocation5], %s1328
          %s1330 = smul.addr %s1325, 4
          %s1331 = sadd.s32 %s1326, %s1330
          %s1332 = smul.addr %s1331, 128
          %s1333 = scalar_lea.hbm %s3, %s1332
          %s1334 = sshll.u32 [#allocation9], 4
          %s1335 = int_to_ptr.vmem [resolvable:$true] %s1334
          %1340 = dma.vmem_to_hbm [thread:$0]  %s1335, 1024, %s1333, [#allocation5], 512, 512, 32
        $region56: #{_linear_call.1} parent=31 // pred_fallthru
          _
        // Predicated region
        $region57: #{_linear_call.1} parent=31 // pred_check
          %p1341 = pneg %p142
        $region58: #{_linear_call.1} parent=31 // pred_check_branch
          %1343 = sbr.rel (%p1341) target = $region60
        $region59: #{_linear_call.1} parent=31 // pred_region
          %1344 = dma.done [#allocation5], 1024
        $region60: #{_linear_call.1} parent=31 // pred_fallthru
          _
      $region32: #{_linear_call.1} parent=5 // pred_fallthru
        _
      %p1345 = scmp.le.s32.totalorder 2, %s16
      // Predicated region
      $region61: #{_linear_call.1} parent=5 // pred_check
        %p1346 = pneg %p1345
      $region62: #{_linear_call.1} parent=5 // pred_check_branch
        %1348 = sbr.rel (%p1346) target = $region64
      $region63: #{_linear_call.1} parent=5 // pred_region
        %s1349 = ssub.s32 %s16, 2
      $region64: #{_linear_call.1} parent=5 // pred_fallthru
        _
    $region6: #{_linear_call.1} parent=1 // loop_footer
      %s20 = sadd.s32 1, %s16
    $region7: #{_linear_call.1} parent=1 // loop_footer_branch
      %15 = sbr.rel target = $region3
    $region8: #{_linear_call.1} parent=1 // loop_exit
      _
    %1350 = vsyncpa [#allocation4], 1
    %s1351 = scalar_lea.sflag [#allocation4], 1
    %1352 = vsyncpa %s1351, 1
    %1353 = vsyncpa [#allocation7], 1
    %s1354 = scalar_lea.sflag [#allocation7], 1
    %1355 = vsyncpa %s1354, 1
    %1356 = vsyncpa [#allocation5], 1
    %s1357 = scalar_lea.sflag [#allocation5], 1
    %1358 = vsyncpa %s1357, 1

</llo_original>
